<compile_context>
chip_gen: v6e
topology: v6e:2x2x1
jax: 0.10.0
libtpu: 0.0.40
codegen_flags: <defaults>
</compile_context>

<pallas_src>
import functools
import math

import jax
import jax.numpy as jnp
from jax.experimental import pallas as pl
from jax.experimental.pallas import tpu as pltpu


def _vmem_limit_bytes():
    """~75% of physical VMEM: ~48 MiB on v7x (64 MiB), ~96 MiB on v5e/v6e."""
    try:
        cap = int(pltpu.get_tpu_info().vmem_capacity_bytes)
    except Exception:
        cap = 64 * 1024 * 1024
    return max(32 * 1024 * 1024, (cap * 3) // 4)


_VMEM_LIMIT = _vmem_limit_bytes()


# ----------------------------------------------------------------------------
# helpers
# ----------------------------------------------------------------------------
def _pick_col_tile(dim, target, align=128):
    """Largest multiple of `align` <= target that divides dim, else full dim."""
    if dim <= target:
        return dim
    t = (target // align) * align
    while t >= align:
        if dim % t == 0:
            return t
        t -= align
    return dim


def _row_tile(M, target):
    """Return (tm, Mp). Prefer a divisor of M (avoids a padded HBM copy)."""
    if M <= target:
        return M, M
    t = (target // 8) * 8
    while t >= 8:
        if M % t == 0:
            return t, M
        t -= 8
    Mp = -(-M // target) * target        # last resort: pad
    return target, Mp


def _pad_rows(a, rows):
    if a.shape[0] == rows:
        return a
    pad = rows - a.shape[0]
    return jnp.concatenate([a, jnp.zeros((pad,) + a.shape[1:], a.dtype)], axis=0)


# ----------------------------------------------------------------------------
# fused matmul kernels:  out = act( (LN(x)|x) @ W + b ) + residual
# ----------------------------------------------------------------------------
def _mm_kernel_single(*refs, has_bias, fuse_ln, act, has_res):
    # refs: x, w, [bias], [ln_g, ln_b], [res], out   (no accumulator: nk == 1)
    it = iter(refs)
    x_ref = next(it)
    w_ref = next(it)
    b_ref = next(it) if has_bias else None
    g_ref = next(it) if fuse_ln else None
    bb_ref = next(it) if fuse_ln else None
    r_ref = next(it) if has_res else None
    o_ref = next(it)

    if fuse_ln:  # exact: tk == K so the full row is resident
        x = x_ref[...].astype(jnp.float32)
        mu = jnp.mean(x, axis=-1, keepdims=True)
        var = jnp.mean(jnp.square(x - mu), axis=-1, keepdims=True)
        x = (x - mu) * jax.lax.rsqrt(var + 1e-5)
        x = (x * g_ref[...] + bb_ref[...]).astype(jnp.bfloat16)
    else:
        x = x_ref[...].astype(jnp.bfloat16)

    y = jnp.dot(x, w_ref[...].astype(jnp.bfloat16),
                preferred_element_type=jnp.float32)
    if has_bias:
        y = y + b_ref[...]
    if act == "quick_gelu":                  # CLIP QuickGELU: x*sigmoid(1.702x)
        y = y * jax.nn.sigmoid(1.702 * y)
    if has_res:
        y = y + r_ref[...].astype(jnp.float32)
    o_ref[...] = y.astype(o_ref.dtype)


def _mm_kernel_multi(*refs, nk, has_bias, act, has_res):
    # refs: x, w, [bias], [res], out, acc   (K tiled; LN never fused here)
    acc_ref = refs[-1]
    o_ref = refs[-2]
    it = iter(refs[:-2])
    x_ref = next(it)
    w_ref = next(it)
    b_ref = next(it) if has_bias else None
    r_ref = next(it) if has_res else None

    kk = pl.program_id(2)

    @pl.when(kk == 0)
    def _():
        acc_ref[...] = jnp.zeros_like(acc_ref)

    acc_ref[...] += jnp.dot(x_ref[...].astype(jnp.bfloat16),
                            w_ref[...].astype(jnp.bfloat16),
                            preferred_element_type=jnp.float32)

    @pl.when(kk == nk - 1)
    def _():
        y = acc_ref[...]
        if has_bias:
            y = y + b_ref[...]
        if act == "quick_gelu":
            y = y * jax.nn.sigmoid(1.702 * y)
        if has_res:
            y = y + r_ref[...].astype(jnp.float32)
        o_ref[...] = y.astype(o_ref.dtype)


def matmul_fused(x, w, bias=None, ln=None, residual=None, act=None,
                 out_dtype=jnp.float32, tm=512, tn=1536, tk=1024):
    """(M,K) @ (K,N) with optional fused pre-LayerNorm, bias, QuickGELU and
    residual add as one gridded Pallas kernel (bf16 MXU operands, f32 math)."""
    M, K = x.shape
    N = w.shape[1]
    has_bias = bias is not None
    fuse_ln = ln is not None
    has_res = residual is not None

    tm_, Mp = _row_tile(M, tm)
    if fuse_ln:
        tk_ = K                                   # LN needs the full row
        # take a full-N column tile when it fits the VMEM budget so the
        # LayerNorm + bf16 cast are done exactly once per row block.
        full_n_bytes = 2 * (K * N * 2 + tm_ * N * 4)
        tn_ = N if full_n_bytes <= (_VMEM_LIMIT // 2) else _pick_col_tile(N, tn)
    else:
        tk_ = _pick_col_tile(K, tk)
        tn_ = _pick_col_tile(N, tn)
    nk = K // tk_

    xp = x if Mp == M else _pad_rows(x, Mp)
    wb = w.astype(jnp.bfloat16)

    args = [xp, wb]
    in_specs = [
        pl.BlockSpec((tm_, tk_), lambda i, j, k: (i, k)),
        pl.BlockSpec((tk_, tn_), lambda i, j, k: (k, j)),
    ]
    if has_bias:
        args.append(bias.reshape(1, N).astype(jnp.float32))
        in_specs.append(pl.BlockSpec((1, tn_), lambda i, j, k: (0, j)))
    if fuse_ln:
        g, b = ln
        args.append(g.reshape(1, K).astype(jnp.float32))
        args.append(b.reshape(1, K).astype(jnp.float32))
        in_specs.append(pl.BlockSpec((1, tk_), lambda i, j, k: (0, k)))
        in_specs.append(pl.BlockSpec((1, tk_), lambda i, j, k: (0, k)))
    if has_res:
        res = residual if Mp == M else _pad_rows(residual, Mp)
        args.append(res)
        in_specs.append(pl.BlockSpec((tm_, tn_), lambda i, j, k: (i, j)))

    flops = 2 * M * N * K
    transcendentals = M * N if act == "quick_gelu" else 0
    bytes_accessed = int(xp.dtype.itemsize * Mp * K + 2 * K * N
                         + jnp.dtype(out_dtype).itemsize * Mp * N
                         + (residual.dtype.itemsize * Mp * N if has_res else 0))

    if nk == 1:
        kernel = functools.partial(_mm_kernel_single, has_bias=has_bias,
                                   fuse_ln=fuse_ln, act=act, has_res=has_res)
        scratch = []
    else:
        kernel = functools.partial(_mm_kernel_multi, nk=nk, has_bias=has_bias,
                                   act=act, has_res=has_res)
        scratch = [pltpu.VMEM((tm_, tn_), jnp.float32)]

    # TODO(synk): on v7x (2 TCs) a single-block parallel grid (small M*N)
    # serializes onto one core; split the row axis when M is large enough.
    out = pl.pallas_call(
        kernel,
        out_shape=jax.ShapeDtypeStruct((Mp, N), out_dtype),
        grid=(Mp // tm_, N // tn_, nk),
        in_specs=in_specs,
        out_specs=pl.BlockSpec((tm_, tn_), lambda i, j, k: (i, j)),
        scratch_shapes=scratch,
        compiler_params=pltpu.CompilerParams(
            dimension_semantics=("parallel", "parallel", "arbitrary"),
            vmem_limit_bytes=_VMEM_LIMIT),
        cost_estimate=pl.CostEstimate(flops=int(flops),
                                      transcendentals=int(transcendentals),
                                      bytes_accessed=bytes_accessed),
    )(*args)
    return out if Mp == M else out[:M]


# ----------------------------------------------------------------------------
# standalone layernorm (only used for ln_pre, which feeds the residual stream)
# ----------------------------------------------------------------------------
def _ln_kernel(x_ref, g_ref, b_ref, o_ref):
    x = x_ref[...].astype(jnp.float32)
    mu = jnp.mean(x, axis=-1, keepdims=True)
    var = jnp.mean(jnp.square(x - mu), axis=-1, keepdims=True)
    y = (x - mu) * jax.lax.rsqrt(var + 1e-5)
    o_ref[...] = (y * g_ref[...] + b_ref[...]).astype(o_ref.dtype)


def layernorm(x, gamma, beta, tm=512):
    M, D = x.shape
    tm_, Mp = _row_tile(M, tm)
    xp = x if Mp == M else _pad_rows(x, Mp)
    out = pl.pallas_call(
        _ln_kernel,
        out_shape=jax.ShapeDtypeStruct((Mp, D), jnp.float32),
        grid=(Mp // tm_,),
        in_specs=[pl.BlockSpec((tm_, D), lambda i: (i, 0)),
                  pl.BlockSpec((1, D), lambda i: (0, 0)),
                  pl.BlockSpec((1, D), lambda i: (0, 0))],
        out_specs=pl.BlockSpec((tm_, D), lambda i: (i, 0)),
        compiler_params=pltpu.CompilerParams(
            dimension_semantics=("parallel",),
            vmem_limit_bytes=_VMEM_LIMIT),
    )(xp, gamma.reshape(1, D).astype(jnp.float32),
      beta.reshape(1, D).astype(jnp.float32))
    return out if Mp == M else out[:M]


# ----------------------------------------------------------------------------
# attention kernel: reads the (B, S, 3W) qkv slab directly, heads in-kernel.
# The 1/sqrt(dh) softmax scale is already folded into the q projection weights.
# ----------------------------------------------------------------------------
def _attn_kernel(qkv_ref, o_ref, *, heads, dh, width):
    qkv = qkv_ref[0]                                  # (S, 3W) bf16
    outs = []
    for h in range(heads):                            # static unrolled head loop
        q = qkv[:, h * dh:(h + 1) * dh]
        k = qkv[:, width + h * dh: width + (h + 1) * dh]
        v = qkv[:, 2 * width + h * dh: 2 * width + (h + 1) * dh]
        s = jnp.dot(q, k.T, preferred_element_type=jnp.float32)   # (S, S)
        m = jnp.max(s, axis=-1, keepdims=True)
        p = jnp.exp(s - m)
        denom = jnp.sum(p, axis=-1, keepdims=True)
        p = p * pl.reciprocal(denom, approx=True)
        outs.append(jnp.dot(p.astype(jnp.bfloat16), v,
                            preferred_element_type=jnp.float32))
    # one lane-dense (S, W) store (W >= 128 for real CLIP widths)
    o_ref[0] = jnp.concatenate(outs, axis=-1).astype(o_ref.dtype)


def attention(qkv, B, S, width, heads, out_dtype=jnp.bfloat16):
    """qkv: (B*S, 3W) slab -> (B*S, W) attention output, gridded over batch."""
    dh = width // heads
    qkv3 = qkv.reshape(B, S, 3 * width)
    # TODO(synk): for very long sequences (e.g. ViT-L/14-336, S=577) tile the
    # kv axis with an online-softmax (flash-style) inner loop to bound VMEM.
    out = pl.pallas_call(
        functools.partial(_attn_kernel, heads=heads, dh=dh, width=width),
        out_shape=jax.ShapeDtypeStruct((B, S, width), out_dtype),
        grid=(B,),
        in_specs=[pl.BlockSpec((1, S, 3 * width), lambda b: (b, 0, 0))],
        out_specs=pl.BlockSpec((1, S, width), lambda b: (b, 0, 0)),
        compiler_params=pltpu.CompilerParams(
            dimension_semantics=("parallel",),
            vmem_limit_bytes=_VMEM_LIMIT),
        cost_estimate=pl.CostEstimate(
            flops=int(4 * B * heads * S * S * dh),
            transcendentals=int(B * heads * S * S),
            bytes_accessed=int(qkv3.size * qkv3.dtype.itemsize
                               + B * S * width * jnp.dtype(out_dtype).itemsize)),
    )(qkv3)
    return out.reshape(B * S, width)


# ----------------------------------------------------------------------------
# Parameters (deterministic synthetic init, shapes per CLIP VisionTransformer)
# ----------------------------------------------------------------------------
def init_params(key, *, in_ch, patch, image_size, width, heads, layers, out_dim):
    grid = image_size // patch
    seq = grid * grid + 1
    keys = iter(jax.random.split(key, 8 + 12 * layers))

    def nrm(shape, s=0.02):
        return jax.random.normal(next(keys), shape, jnp.float32) * s

    wdt = jnp.bfloat16  # MXU-side weight dtype (halves HBM traffic / VMEM)
    dh = width // heads
    qscale = 1.0 / math.sqrt(dh)

    params = {
        "patch": patch, "width": width, "heads": heads, "out_dim": out_dim,
        # conv1 weight (no bias) stored flattened (C*P*P, width); flattening
        # order matches the PyTorch conv weight (c, ph, pw).
        "conv_w": nrm((in_ch * patch * patch, width)).astype(wdt),
        "class_emb": nrm((width,)),
        "pos_emb": nrm((seq, width)),
        "ln_pre_g": jnp.ones((width,), jnp.float32),
        "ln_pre_b": jnp.zeros((width,), jnp.float32),
        "ln_post_g": jnp.ones((width,), jnp.float32),
        "ln_post_b": jnp.zeros((width,), jnp.float32),
        "proj": nrm((width, out_dim)).astype(wdt),
        "blocks": [],
    }
    # fold the 1/sqrt(dh) softmax scale into the q columns of the qkv
    # projection (mathematically identical to scaling q at runtime).
    col_scale = jnp.concatenate([jnp.full((width,), qscale, jnp.float32),
                                 jnp.ones((2 * width,), jnp.float32)])
    for _ in range(layers):
        in_w = nrm((width, 3 * width)) * col_scale[None, :]
        in_b = nrm((3 * width,)) * col_scale
        blk = {
            "ln1_g": jnp.ones((width,), jnp.float32),
            "ln1_b": jnp.zeros((width,), jnp.float32),
            "in_w": in_w.astype(wdt),                    # qkv in-proj (in,out)
            "in_b": in_b,
            "out_w": nrm((width, width)).astype(wdt),    # attn out-proj
            "out_b": nrm((width,)),
            "ln2_g": jnp.ones((width,), jnp.float32),
            "ln2_b": jnp.zeros((width,), jnp.float32),
            "fc_w": nrm((width, 4 * width)).astype(wdt),  # mlp c_fc
            "fc_b": nrm((4 * width,)),
            "pr_w": nrm((4 * width, width)).astype(wdt),  # mlp c_proj
            "pr_b": nrm((width,)),
        }
        params["blocks"].append(blk)
    return params


# ----------------------------------------------------------------------------
# Forward pass (CLIP VisionTransformer.forward semantics)
# ----------------------------------------------------------------------------
def residual_block(x2d, blk, B, S, width, heads):
    # --- attention branch: ln_1 fused into the qkv projection, softmax scale
    # pre-folded into q weights, heads handled inside the attention kernel,
    # qkv slab and attention output kept bf16 in HBM ---
    qkv = matmul_fused(x2d, blk["in_w"], bias=blk["in_b"],
                       ln=(blk["ln1_g"], blk["ln1_b"]),
                       out_dtype=jnp.bfloat16)                  # (B*S, 3W)
    o = attention(qkv, B, S, width, heads, out_dtype=jnp.bfloat16)
    # out-proj with the residual add fused into the kernel (residual stream f32)
    x2d = matmul_fused(o, blk["out_w"], bias=blk["out_b"], residual=x2d)

    # --- MLP branch: ln_2 + QuickGELU fused into c_fc (bf16 hidden),
    # residual add fused into c_proj ---
    h = matmul_fused(x2d, blk["fc_w"], bias=blk["fc_b"],
                     ln=(blk["ln2_g"], blk["ln2_b"]), act="quick_gelu",
                     out_dtype=jnp.bfloat16)
    x2d = matmul_fused(h, blk["pr_w"], bias=blk["pr_b"], residual=x2d)
    return x2d


def encode_image(x_nchw, params):
    # input is NCHW float32, identical to the PyTorch module.
    B, C, H, W = x_nchw.shape
    P = params["patch"]
    width = params["width"]
    heads = params["heads"]
    g = H // P

    # conv1 (stride=patch, kernel=patch, no bias) == patch extraction + matmul
    xp = x_nchw.reshape(B, C, g, P, g, P)
    xp = jnp.transpose(xp, (0, 2, 4, 1, 3, 5)).reshape(B * g * g, C * P * P)
    patches = matmul_fused(xp, params["conv_w"])                  # no bias
    tokens = patches.reshape(B, g * g, width)

    # prepend class token, add positional embedding
    cls = jnp.broadcast_to(params["class_emb"].astype(jnp.float32)[None, None, :],
                           (B, 1, width))
    x = jnp.concatenate([cls, tokens], axis=1)                    # (B, S, width)
    x = x + params["pos_emb"].astype(jnp.float32)[None, :, :]
    S = x.shape[1]

    x2d = x.reshape(B * S, width)
    x2d = layernorm(x2d, params["ln_pre_g"], params["ln_pre_b"])  # ln_pre

    for blk in params["blocks"]:
        x2d = residual_block(x2d, blk, B, S, width, heads)

    x = x2d.reshape(B, S, width)
    cls_out = x[:, 0, :]                                          # (B, width)
    # ln_post fused into the final projection (x @ proj, no bias)
    out = matmul_fused(cls_out, params["proj"],
                       ln=(params["ln_post_g"], params["ln_post_b"]))
    return out                                                    # (B, out_dim)


# ----------------------------------------------------------------------------
if __name__ == "__main__":
    key = jax.random.PRNGKey(0)
    kp, kx = jax.random.split(key)

    # Small ViT-style config (same structure as CLIP ViT-B/32, scaled down):
    B, C, IMG, PATCH = 2, 3, 16, 8        # -> grid=2, seq = 1 + 4 = 5
    WIDTH, HEADS, LAYERS, OUT_DIM = 32, 4, 2, 16

    params = init_params(kp, in_ch=C, patch=PATCH, image_size=IMG,
                         width=WIDTH, heads=HEADS, layers=LAYERS,
                         out_dim=OUT_DIM)
    x = jax.random.normal(kx, (B, C, IMG, IMG), jnp.float32)

    out = encode_image(x, params)
    jax.block_until_ready(out)
    assert out.shape == (B, OUT_DIM) and out.dtype == jnp.float32
    assert bool(jnp.all(jnp.isfinite(out)))
    print("KERNEL_OK")
</pallas_src>

<mosaic_0001>
module attributes {stable_mosaic.version = 11 : i64} {
  func.func @_mm_kernel_single(%arg0: i32, %arg1: i32, %arg2: i32, %arg3: memref<8x192xf32, #tpu.memory_space<vmem>>, %arg4: memref<192x32xbf16, #tpu.memory_space<vmem>>, %arg5: memref<8x32xf32, #tpu.memory_space<vmem>>) attributes {dimension_semantics = [#tpu.dimension_semantics<parallel>, #tpu.dimension_semantics<parallel>, #tpu.dimension_semantics<arbitrary>], iteration_bounds = array<i64: 1, 1, 1>, scalar_prefetch = 0 : i64, scratch_operands = 0 : i64, tpu.core_type = #tpu.core_type<tc>, window_params = [{transform_indices = @transform_0, window_bounds = array<i64: 8, 192>}, {transform_indices = @transform_1, window_bounds = array<i64: 192, 32>}, {transform_indices = @transform_2, window_bounds = array<i64: 8, 32>}]} {
    %c0 = arith.constant 0 : index
    %c0_0 = arith.constant 0 : index
    %0 = vector.load %arg3[%c0, %c0_0] : memref<8x192xf32, #tpu.memory_space<vmem>>, vector<8x192xf32>
    %1 = arith.truncf %0 : vector<8x192xf32> to vector<8x192xbf16>
    %c0_1 = arith.constant 0 : index
    %c0_2 = arith.constant 0 : index
    %2 = vector.load %arg4[%c0_1, %c0_2] : memref<192x32xbf16, #tpu.memory_space<vmem>>, vector<192x32xbf16>
    %cst = arith.constant dense<0.000000e+00> : vector<8x32xf32>
    %3 = tpu.matmul %1, %2, %cst {dimension_numbers = #tpu.dot_dimension_numbers<[1], [0], [0], [1], [0, 0, 1, 1], [], []>} : vector<8x192xbf16>, vector<192x32xbf16>, vector<8x32xf32> -> vector<8x32xf32>
    %c0_3 = arith.constant 0 : index
    %c0_4 = arith.constant 0 : index
    %4 = vector.load %arg5[%c0_3, %c0_4] : memref<8x32xf32, #tpu.memory_space<vmem>>, vector<8x32xf32>
    tpu.vector_store %arg5[%c0_3, %c0_4], %3 {strides = array<i32>} : memref<8x32xf32, #tpu.memory_space<vmem>>, vector<8x32xf32>,
    return
  }
  func.func @transform_0(%arg0: i32, %arg1: i32, %arg2: i32) -> (i32, i32) {
    %c0_i32 = arith.constant 0 : i32
    return %arg0, %arg2 : i32, i32
  }
  func.func @transform_1(%arg0: i32, %arg1: i32, %arg2: i32) -> (i32, i32) {
    %c0_i32 = arith.constant 0 : i32
    return %arg2, %arg1 : i32, i32
  }
  func.func @transform_2(%arg0: i32, %arg1: i32, %arg2: i32) -> (i32, i32) {
    %c0_i32 = arith.constant 0 : i32
    return %arg0, %arg1 : i32, i32
  }
}

</mosaic_0001>

<llo_original>
// kernel: tpu_custom_call.1
$region0: #{tpu_custom_call.1}
  #allocation0 [shape = 'u32[]', space=smem, size = 0x4, offset = 0x4, fixed_abs, tag = 'smem constant byte address 0x4 - core index']
  #allocation1 [shape = 'u32[144,128]{1,0:T(1,128)}', space=vmem, size = 0x12000, scoped, tag = 'internal scratch']
  %s0 = inlined_call_operand.vmem [shape: f32[8,192], index: 0, kind: input, shape index: {}]
  %s1 = inlined_call_operand.vmem [shape: bf16[192,32], index: 1, kind: input, shape index: {}]
  %s2 = inlined_call_operand.hbm [shape: f32[8,32], index: 2, kind: output, shape index: {}]
  %s3 = sld [smem:[#allocation0]]
  $region18: #{tpu_custom_call.1} parent=0
    _
  %s5 = ssub.s32 1, %s3
  %s6 = scalar_select 0, %s5, %s3
  $region1: #{tpu_custom_call.1} parent=0
    #allocation2 [shape = 'u8[4096]{0}', space=vmem, size = 0x1000, scoped, tag = 'output window, operand 0, single buffered']
    #allocation3 [shape = 's32[1]{0}', space=sflag, size = 0x4, scoped, tag = 'scoped memory for tpu_custom_call.1']
    %7 = vsyncpa [#allocation3], 0
    // Predicated region
    $region2: #{tpu_custom_call.1} parent=1 // pred_check
      _
    $region3: #{tpu_custom_call.1} parent=1 // pred_check_branch
      %9 = sbr.rel (0) target = $region5
    $region4: #{tpu_custom_call.1} parent=1 // pred_region
      _
    $region5: #{tpu_custom_call.1} parent=1 // pred_fallthru
      _
    // Predicated region
    $region6: #{tpu_custom_call.1} parent=1 // pred_check
      _
    $region7: #{tpu_custom_call.1} parent=1 // pred_check_branch
      %11 = sbr.rel (0) target = $region9
    $region8: #{tpu_custom_call.1} parent=1 // pred_region
      _
    $region9: #{tpu_custom_call.1} parent=1 // pred_fallthru
      _
    %v13 = vld [vmem:[%s0] sm:$0xff]
    %v14 = vld [vmem:[%s0 + $0x8] sm:$0xff]
    %v15 = vpack.c.bf16 %v13, %v13
    %v16 = vpack.c.bf16 %v14, %v14
    %v17 = vld [vmem:[%s1] sm:$0xf]
    %v18 = vld [vmem:[%s1 + $0x4] sm:$0xf]
    %v19 = vld [vmem:[%s1 + $0x8] sm:$0xf]
    %v20 = vld [vmem:[%s1 + $0xc] sm:$0xf]
    %v21 = vld [vmem:[%s1 + $0x10] sm:$0xf]
    %v22 = vld [vmem:[%s1 + $0x14] sm:$0xf]
    %v23 = vld [vmem:[%s1 + $0x18] sm:$0xf]
    %v24 = vld [vmem:[%s1 + $0x1c] sm:$0xf]
    %v25 = vld [vmem:[%s1 + $0x20] sm:$0xf]
    %v26 = vld [vmem:[%s1 + $0x24] sm:$0xf]
    %v27 = vld [vmem:[%s1 + $0x28] sm:$0xf]
    %v28 = vld [vmem:[%s1 + $0x2c] sm:$0xf]
    %v29 = vld [vmem:[%s1 + $0x30] sm:$0xf]
    %v30 = vld [vmem:[%s1 + $0x34] sm:$0xf]
    %v31 = vld [vmem:[%s1 + $0x38] sm:$0xf]
    %v32 = vld [vmem:[%s1 + $0x3c] sm:$0xf]
    %v33 = vld [vmem:[%s1 + $0x40] sm:$0xf]
    %v34 = vld [vmem:[%s1 + $0x44] sm:$0xf]
    %v35 = vld [vmem:[%s1 + $0x48] sm:$0xf]
    %v36 = vld [vmem:[%s1 + $0x4c] sm:$0xf]
    %v37 = vld [vmem:[%s1 + $0x50] sm:$0xf]
    %v38 = vld [vmem:[%s1 + $0x54] sm:$0xf]
    %v39 = vld [vmem:[%s1 + $0x58] sm:$0xf]
    %v40 = vld [vmem:[%s1 + $0x5c] sm:$0xf]
    %v65 = vunpack.c.l.b16 %v17
    %v66 = vunpack.c.l.b16 %v18
    %v67 = vunpack.c.l.b16 %v19
    %v68 = vunpack.c.l.b16 %v20
    %v69 = vunpack.c.l.b16 %v21
    %v70 = vunpack.c.l.b16 %v22
    %v71 = vunpack.c.l.b16 %v23
    %v72 = vunpack.c.l.b16 %v24
    %v73 = vunpack.c.l.b16 %v25
    %v74 = vunpack.c.l.b16 %v26
    %v75 = vunpack.c.l.b16 %v27
    %v76 = vunpack.c.l.b16 %v28
    %v77 = vunpack.c.l.b16 %v29
    %v78 = vunpack.c.l.b16 %v30
    %v79 = vunpack.c.l.b16 %v31
    %v80 = vunpack.c.l.b16 %v32
    %v81 = vunpack.c.l.b16 %v33
    %v82 = vunpack.c.l.b16 %v34
    %v83 = vunpack.c.l.b16 %v35
    %v84 = vunpack.c.l.b16 %v36
    %v85 = vunpack.c.l.b16 %v37
    %v86 = vunpack.c.l.b16 %v38
    %v87 = vunpack.c.l.b16 %v39
    %v88 = vunpack.c.l.b16 %v40
    %v89 = vpack.c.b16 %v66, %v65
    %v90 = vpack.c.b16 %v68, %v67
    %v91 = vpack.c.b16 %v70, %v69
    %v92 = vpack.c.b16 %v72, %v71
    %v93 = vpack.c.b16 %v74, %v73
    %v94 = vpack.c.b16 %v76, %v75
    %v95 = vpack.c.b16 %v78, %v77
    %v96 = vpack.c.b16 %v80, %v79
    %v97 = vpack.c.b16 %v82, %v81
    %v98 = vpack.c.b16 %v84, %v83
    %v99 = vpack.c.b16 %v86, %v85
    %v100 = vpack.c.b16 %v88, %v87
    %vm113 = vcmask 523264
    %v115 = vsel %vm113, %v16, 0
    %117 = vmatprep.subr.bf16.mxu0 0
    %118 = vmatpush1.bf16.msra.mxu0 %v96
    %119 = vmatprep.subr.bf16.mxu0 0
    %120 = vmatpush1.bf16.msra.mxu0 %v95
    %121 = vmatprep.subr.bf16.mxu0 0
    %122 = vmatpush1.bf16.msra.mxu0 %v94
    %123 = vmatprep.subr.bf16.mxu0 0
    %124 = vmatpush1.bf16.msra.mxu0 %v93
    %125 = vmatprep.subr.bf16.mxu0 0
    %126 = vmatpush1.bf16.msra.mxu0 %v92
    %127 = vmatprep.subr.bf16.mxu0 0
    %128 = vmatpush1.bf16.msra.mxu0 %v91
    %129 = vmatprep.subr.bf16.mxu0 0
    %130 = vmatpush1.bf16.msra.mxu0 %v90
    %131 = vmatprep.subr.bf16.mxu0 0
    %132 = vmatpush1.bf16.msra.mxu0 %v89
    %133 = vmatprep.subr.bf16.mxu0 0
    %134 = vmatpush2.bf16.msra.mxu0 0
    %135 = vmatprep.subr.bf16.mxu0 0
    %136 = vmatpush2.bf16.msra.mxu0 0
    %137 = vmatprep.subr.bf16.mxu0 0
    %138 = vmatpush2.bf16.msra.mxu0 0
    %139 = vmatprep.subr.bf16.mxu0 0
    %140 = vmatpush2.bf16.msra.mxu0 0
    %141 = vmatprep.subr.bf16.mxu0 0
    %142 = vmatpush2.bf16.msra.mxu0 %v100
    %143 = vmatprep.subr.bf16.mxu0 0
    %144 = vmatpush2.bf16.msra.mxu0 %v99
    %145 = vmatprep.subr.bf16.mxu0 0
    %146 = vmatpush2.bf16.msra.mxu0 %v98
    %147 = vmatprep.subr.bf16.mxu0 0
    %148 = vmatpush2.bf16.msra.mxu0 %v97
    %149 = vmatprep.mubr.bf16.mxu0 %v115
    %150 = vmatmul.mubr.bf16.gmra.mxu0 %v15
    %v151 = vpop.f32.mrf.mxu0
    %v152 = vadd.f32 0.0, %v151
    %v153 = vpop.f32.mrf.mxu0
    %v154 = vpop.f32.mrf.mxu0
    %v155 = vpop.f32.mrf.mxu0
    %156 = vdwg.mxu0
    %vm157 = vcmask 261120
    %158 = vst.msk [vmem:[#allocation2] sm:$0xff] %vm157, %v152
    // Predicated region
    $region10: #{tpu_custom_call.1} parent=1 // pred_check
      _
    $region11: #{tpu_custom_call.1} parent=1 // pred_check_branch
      %160 = sbr.rel (0) target = $region13
    $region12: #{tpu_custom_call.1} parent=1 // pred_region
      %s162 = ssub.s32 128, 128
      %163 = vsyncadd [#allocation3], %s162
      %s165 = sshll.u32 [#allocation2], 4
      %s166 = int_to_ptr.vmem [resolvable:$true] %s165
      %168 = dma.vmem_to_hbm [thread:$0]  %s166, 128, %s2, [#allocation3]
    $region13: #{tpu_custom_call.1} parent=1 // pred_fallthru
      _
    // Predicated region
    $region14: #{tpu_custom_call.1} parent=1 // pred_check
      _
    $region15: #{tpu_custom_call.1} parent=1 // pred_check_branch
      %170 = sbr.rel (0) target = $region17
    $region16: #{tpu_custom_call.1} parent=1 // pred_region
      %171 = dma.done [#allocation3], 128
    $region17: #{tpu_custom_call.1} parent=1 // pred_fallthru
      _
    %172 = vsyncpa [#allocation3], 1

</llo_original>
